<compile_context>
chip_gen: v7x
topology: tpu7x:2x2x1
jax: 0.10.0
libtpu: 0.0.40
codegen_flags: <defaults>
</compile_context>

<pallas_src>
import functools

import jax
import jax.numpy as jnp
from jax import lax
from jax.experimental import pallas as pl
from jax.experimental.pallas import tpu as pltpu

NEG_SLOPE = 0.01  # torch.nn.LeakyReLU default negative_slope


def _leaky_relu(x):
    return jnp.where(x > 0, x, NEG_SLOPE * x)


def cnn_encoder_kernel(xt_ref, w1_ref, b1_ref, w2_ref, b2_ref, wf_ref, bf_ref,
                       o_ref, *, l_pad, l_valid):
    """One grid step processes TB batch rows.

    xt_ref : (TB*l_pad, 3*Din) bf16  pre-built conv1 taps [x[l-1] | x[l] | x[l+1]]
    w1_ref : (3*Din, 64)  bf16       fused conv1 weight
    w2_ref : (192, 128)   bf16       fused conv2 weight
    wf_ref : (128, Epad)  bf16       fc weight with 1/L (mean pool) folded in
    o_ref  : (TB, Epad)   f32        lane-dense output slab
    """
    xt = xt_ref[...]
    m = xt.shape[0]
    tb = m // l_pad

    # ---- conv1: one matmul on pre-laid-out taps (bf16 MXU, f32 accumulate) ----
    y1 = jnp.dot(xt, w1_ref[...], preferred_element_type=jnp.float32) + b1_ref[...]
    c1 = y1.shape[-1]
    h1 = _leaky_relu(y1).reshape(tb, l_pad, c1)          # f32; l_pad % 8 == 0 -> free split

    pos = lax.broadcasted_iota(jnp.int32, (tb, l_pad, 1), 1)
    if l_valid < l_pad:
        # zero L-padding rows so they neither leak into conv2's right tap nor the pool
        h1 = jnp.where(pos < l_valid, h1, 0.0)

    # ---- conv2 taps via XLU roll + boundary masks (no pad/slice/concat shuffles) ----
    hm1 = jnp.where(pos == 0, 0.0, pltpu.roll(h1, shift=1, axis=1))                   # h1[l-1]
    hp1 = jnp.where(pos == l_pad - 1, 0.0, pltpu.roll(h1, shift=l_pad - 1, axis=1))   # h1[l+1]
    taps = jnp.concatenate([hm1, h1, hp1], axis=-1)      # (tb, l_pad, 192) f32

    y2 = jnp.dot(taps.reshape(m, 3 * c1).astype(jnp.bfloat16), w2_ref[...],
                 preferred_element_type=jnp.float32) + b2_ref[...]
    c2 = y2.shape[-1]
    h2 = _leaky_relu(y2).reshape(tb, l_pad, c2)
    if l_valid < l_pad:
        h2 = jnp.where(pos < l_valid, h2, 0.0)

    # ---- pool (sum over L; the 1/L lives in wf) + fc (lane-dense store) ----
    pooled = jnp.sum(h2, axis=1).astype(jnp.bfloat16)    # (tb, 128)
    o_ref[...] = (jnp.dot(pooled, wf_ref[...], preferred_element_type=jnp.float32)
                  + bf_ref[...])


def _tpu_generation():
    try:
        kind = jax.devices()[0].device_kind.lower()
    except Exception:
        return None
    for g in ("v7", "v6", "v5"):
        if g in kind:
            return g
    return None


def _pick_batch_tile(batch, l_pad, din, gen):
    """Rows per grid step, sized against a generation-aware VMEM budget."""
    # generous f32-equivalent per-row working set (taps, h1, h2, rolls, double-buffered io)
    bytes_per_row = l_pad * (12 * din + 3328) + 4096
    budget = {"v5": 16 << 20, "v6": 40 << 20, "v7": 20 << 20}.get(gen, 16 << 20)
    tb = max(8, budget // bytes_per_row)
    if gen == "v7" and batch >= 16:
        # 2 TensorCores per chip: keep >= 2 grid tiles so the "parallel" axis can shard
        tb = min(tb, ((batch + 1) // 2 + 7) // 8 * 8)
    if batch <= tb:
        return batch, bytes_per_row
    return max(8, (min(tb, 1024) // 8) * 8), bytes_per_row


def prepare_params(params, seq_len):
    """One-time weight fusion / lane padding / bf16 cast (hoisted out of the forward).

    The returned weights are bound to `seq_len`: the 1/seq_len of the mean pool is
    folded into the fc weight so the kernel only does a sum over L.
    """
    w1, b1, w2, b2, wf, bf = params
    c1 = w1.shape[0]
    c2 = w2.shape[0]
    e = wf.shape[0]
    # tap order [x[l-1] | x[l] | x[l+1]] matches Conv1d(k=3, p=1) weight taps k=0,1,2
    w1f = jnp.concatenate([w1[:, :, 0].T, w1[:, :, 1].T, w1[:, :, 2].T], axis=0)   # (3*Din, 64)
    w2f = jnp.concatenate([w2[:, :, 0].T, w2[:, :, 1].T, w2[:, :, 2].T], axis=0)   # (192, 128)
    e_pad = max(128, ((e + 127) // 128) * 128)                                     # lane-dense fc
    wf_pad = jnp.zeros((c2, e_pad), jnp.float32).at[:, :e].set(wf.T / float(seq_len))
    bf_pad = jnp.zeros((1, e_pad), jnp.float32).at[:, :e].set(bf.reshape(1, e))
    return (w1f.astype(jnp.bfloat16), b1.reshape(1, c1).astype(jnp.float32),
            w2f.astype(jnp.bfloat16), b2.reshape(1, c2).astype(jnp.float32),
            wf_pad.astype(jnp.bfloat16), bf_pad)


def cnn_encoder_forward(x, prepared, *, embedding_dim):
    """x: (B, L, C_in) float32.  Returns (B, embedding_dim) float32."""
    w1f, b1, w2f, b2, wf_pad, bf_pad = prepared
    batch, seq, din = x.shape
    k1, c1 = w1f.shape
    c2 = w2f.shape[1]
    e_pad = wf_pad.shape[1]

    l_pad = ((seq + 7) // 8) * 8                         # sublane-aligned L
    gen = _tpu_generation()
    tb, bytes_per_row = _pick_batch_tile(batch, l_pad, din, gen)
    n_tiles = pl.cdiv(batch, tb)
    b_pad = n_tiles * tb

    # conv1 taps built once in XLA with the true zero boundaries of padding=1
    xm1 = jnp.pad(x[:, : seq - 1, :], ((0, 0), (1, 0), (0, 0)))    # x[l-1]
    xp1 = jnp.pad(x[:, 1:, :], ((0, 0), (0, 1), (0, 0)))           # x[l+1]
    x_taps = jnp.concatenate([xm1, x, xp1], axis=-1)               # (B, L, 3*Din)
    x_taps = jnp.pad(x_taps, ((0, b_pad - batch), (0, l_pad - seq), (0, 0)))
    x_taps = x_taps.astype(jnp.bfloat16).reshape(b_pad * l_pad, 3 * din)

    weight_bytes = ((w1f.size + w2f.size + wf_pad.size) * 2
                    + (b1.size + b2.size + bf_pad.size) * 4)
    vmem_needed = tb * bytes_per_row + weight_bytes + 2 * tb * e_pad * 4 + (4 << 20)
    vmem_cap = (56 << 20) if gen == "v7" else (110 << 20)
    vmem_limit = int(min(vmem_cap, max(32 << 20, vmem_needed)))

    flops = 2 * b_pad * l_pad * (k1 * c1 + 3 * c1 * c2) + 2 * b_pad * c2 * e_pad
    bytes_accessed = b_pad * l_pad * 3 * din * 2 + weight_bytes + b_pad * e_pad * 4

    kernel = functools.partial(cnn_encoder_kernel, l_pad=l_pad, l_valid=seq)
    full2d = lambda shp: pl.BlockSpec(shp, lambda i: (0, 0))

    out = pl.pallas_call(
        kernel,
        out_shape=jax.ShapeDtypeStruct((b_pad, e_pad), jnp.float32),
        grid=(n_tiles,),
        in_specs=[
            pl.BlockSpec((tb * l_pad, 3 * din), lambda i: (i, 0)),
            full2d((k1, c1)), full2d((1, c1)),
            full2d((3 * c1, c2)), full2d((1, c2)),
            full2d((c2, e_pad)), full2d((1, e_pad)),
        ],
        out_specs=pl.BlockSpec((tb, e_pad), lambda i: (i, 0)),
        compiler_params=pltpu.CompilerParams(
            dimension_semantics=("parallel",),
            vmem_limit_bytes=vmem_limit),
        cost_estimate=pl.CostEstimate(flops=flops, transcendentals=0,
                                      bytes_accessed=bytes_accessed),
    )(x_taps, w1f, b1, w2f, b2, wf_pad, bf_pad)

    return out[:batch, :embedding_dim]


def cnn_encoder_reference(x, params):
    """Pure-JAX f32 reference matching the PyTorch forward exactly."""
    w1, b1, w2, b2, wf, bf = params
    h = jnp.transpose(x, (0, 2, 1))                      # (B, Cin, L) == NCL

    def conv1d(h, w, b):
        y = lax.conv_general_dilated(h, w, window_strides=(1,), padding=((1, 1),),
                                     dimension_numbers=("NCH", "OIH", "NCH"))
        return y + b[None, :, None]

    h = jax.nn.leaky_relu(conv1d(h, w1, b1), NEG_SLOPE)
    h = jax.nn.leaky_relu(conv1d(h, w2, b2), NEG_SLOPE)
    pooled = jnp.mean(h, axis=2)                         # (B, 128)
    return pooled @ wf.T + bf


def init_params(key, input_dim, embedding_dim):
    ks = jax.random.split(key, 6)
    scale = 0.1
    w1 = scale * jax.random.normal(ks[0], (64, input_dim, 3), jnp.float32)
    b1 = scale * jax.random.normal(ks[1], (64,), jnp.float32)
    w2 = scale * jax.random.normal(ks[2], (128, 64, 3), jnp.float32)
    b2 = scale * jax.random.normal(ks[3], (128,), jnp.float32)
    wf = scale * jax.random.normal(ks[4], (embedding_dim, 128), jnp.float32)
    bf = scale * jax.random.normal(ks[5], (embedding_dim,), jnp.float32)
    return (w1, b1, w2, b2, wf, bf)


if __name__ == "__main__":
    B, L, INPUT_DIM, EMBEDDING_DIM = 2, 8, 4, 32

    key = jax.random.PRNGKey(0)
    k_x, k_p = jax.random.split(key)
    x = jax.random.normal(k_x, (B, L, INPUT_DIM), jnp.float32)
    params = init_params(k_p, INPUT_DIM, EMBEDDING_DIM)
    prepared = prepare_params(params, seq_len=L)         # one-time weight prep (hoisted)

    fwd = jax.jit(cnn_encoder_forward, static_argnames=("embedding_dim",))
    out = jax.block_until_ready(fwd(x, prepared, embedding_dim=EMBEDDING_DIM))
    ref = jax.block_until_ready(cnn_encoder_reference(x, params))

    assert out.shape == (B, EMBEDDING_DIM), out.shape
    # bf16 MXU operands (f32 accumulation) -> tolerance loosened vs the f32 reference
    assert jnp.allclose(out, ref, atol=5e-2, rtol=5e-2), float(jnp.max(jnp.abs(out - ref)))
    print("KERNEL_OK")
</pallas_src>

<mosaic_0001>
module attributes {stable_mosaic.version = 11 : i64} {
  func.func @cnn_encoder_kernel(%arg0: i32, %arg1: memref<16x12xbf16, #tpu.memory_space<vmem>>, %arg2: memref<12x64xbf16, #tpu.memory_space<vmem>>, %arg3: memref<1x64xf32, #tpu.memory_space<vmem>>, %arg4: memref<192x128xbf16, #tpu.memory_space<vmem>>, %arg5: memref<1x128xf32, #tpu.memory_space<vmem>>, %arg6: memref<128x128xbf16, #tpu.memory_space<vmem>>, %arg7: memref<1x128xf32, #tpu.memory_space<vmem>>, %arg8: memref<2x128xf32, #tpu.memory_space<vmem>>) attributes {dimension_semantics = [#tpu.dimension_semantics<parallel>], iteration_bounds = array<i64: 1>, scalar_prefetch = 0 : i64, scratch_operands = 0 : i64, tpu.core_type = #tpu.core_type<tc>, window_params = [{transform_indices = @transform_0, window_bounds = array<i64: 16, 12>}, {pipeline_mode = #tpu.pipeline_mode<synchronous>, transform_indices = @transform_1, window_bounds = array<i64: 12, 64>}, {pipeline_mode = #tpu.pipeline_mode<synchronous>, transform_indices = @transform_2, window_bounds = array<i64: 1, 64>}, {pipeline_mode = #tpu.pipeline_mode<synchronous>, transform_indices = @transform_3, window_bounds = array<i64: 192, 128>}, {pipeline_mode = #tpu.pipeline_mode<synchronous>, transform_indices = @transform_4, window_bounds = array<i64: 1, 128>}, {pipeline_mode = #tpu.pipeline_mode<synchronous>, transform_indices = @transform_5, window_bounds = array<i64: 128, 128>}, {pipeline_mode = #tpu.pipeline_mode<synchronous>, transform_indices = @transform_6, window_bounds = array<i64: 1, 128>}, {transform_indices = @transform_7, window_bounds = array<i64: 2, 128>}]} {
    %c0 = arith.constant 0 : index
    %c0_0 = arith.constant 0 : index
    %0 = vector.load %arg1[%c0, %c0_0] : memref<16x12xbf16, #tpu.memory_space<vmem>>, vector<16x12xbf16>
    %c0_1 = arith.constant 0 : index
    %c0_2 = arith.constant 0 : index
    %1 = vector.load %arg2[%c0_1, %c0_2] : memref<12x64xbf16, #tpu.memory_space<vmem>>, vector<12x64xbf16>
    %cst = arith.constant dense<0.000000e+00> : vector<16x64xf32>
    %2 = tpu.matmul %0, %1, %cst {dimension_numbers = #tpu.dot_dimension_numbers<[1], [0], [0], [1], [0, 0, 1, 1], [], []>} : vector<16x12xbf16>, vector<12x64xbf16>, vector<16x64xf32> -> vector<16x64xf32>
    %c0_3 = arith.constant 0 : index
    %c0_4 = arith.constant 0 : index
    %3 = vector.load %arg3[%c0_3, %c0_4] : memref<1x64xf32, #tpu.memory_space<vmem>>, vector<1x64xf32>
    %4 = vector.broadcast %3 : vector<1x64xf32> to vector<16x64xf32>
    %5 = arith.addf %2, %4 : vector<16x64xf32>
    %cst_5 = arith.constant 0.000000e+00 : f32
    %6 = vector.broadcast %cst_5 : f32 to vector<16x64xf32>
    %7 = arith.cmpf ogt, %5, %6 : vector<16x64xf32>
    %cst_6 = arith.constant 0.00999999977 : f32
    %8 = vector.broadcast %cst_6 : f32 to vector<16x64xf32>
    %9 = arith.mulf %8, %5 : vector<16x64xf32>
    %10 = arith.select %7, %5, %9 : vector<16x64xi1>, vector<16x64xf32>
    %11 = vector.shape_cast %10 : vector<16x64xf32> to vector<2x8x64xf32>
    %12 = tpu.iota {dimensions = array<i32: 1>} : vector<2x8x1xi32>
    %c0_i32 = arith.constant 0 : i32
    %13 = vector.broadcast %c0_i32 : i32 to vector<2x8x1xi32>
    %14 = arith.cmpi eq, %12, %13 : vector<2x8x1xi32>
    %c1_i32 = arith.constant 1 : i32
    %15 = tpu.dynamic_rotate %11 by %c1_i32 dim 1 : vector<2x8x64xf32>, i32 -> vector<2x8x64xf32>
    %cst_7 = arith.constant 0.000000e+00 : f32
    %16 = vector.shape_cast %14 : vector<2x8x1xi1> to vector<2x8x1xi1>
    %17 = vector.broadcast %16 : vector<2x8x1xi1> to vector<2x8x64xi1>
    %18 = vector.broadcast %cst_7 : f32 to vector<2x8x64xf32>
    %19 = arith.select %17, %18, %15 : vector<2x8x64xi1>, vector<2x8x64xf32>
    %c7_i32 = arith.constant 7 : i32
    %20 = vector.broadcast %c7_i32 : i32 to vector<2x8x1xi32>
    %21 = arith.cmpi eq, %12, %20 : vector<2x8x1xi32>
    %c7_i32_8 = arith.constant 7 : i32
    %22 = tpu.dynamic_rotate %11 by %c7_i32_8 dim 1 : vector<2x8x64xf32>, i32 -> vector<2x8x64xf32>
    %cst_9 = arith.constant 0.000000e+00 : f32
    %23 = vector.shape_cast %21 : vector<2x8x1xi1> to vector<2x8x1xi1>
    %24 = vector.broadcast %23 : vector<2x8x1xi1> to vector<2x8x64xi1>
    %25 = vector.broadcast %cst_9 : f32 to vector<2x8x64xf32>
    %26 = arith.select %24, %25, %22 : vector<2x8x64xi1>, vector<2x8x64xf32>
    %27 = tpu.concatenate %19, %11, %26 in 2 : vector<2x8x64xf32>, vector<2x8x64xf32>, vector<2x8x64xf32> -> vector<2x8x192xf32>
    %28 = vector.shape_cast %27 : vector<2x8x192xf32> to vector<16x192xf32>
    %29 = arith.truncf %28 : vector<16x192xf32> to vector<16x192xbf16>
    %c0_10 = arith.constant 0 : index
    %c0_11 = arith.constant 0 : index
    %30 = vector.load %arg4[%c0_10, %c0_11] : memref<192x128xbf16, #tpu.memory_space<vmem>>, vector<192x128xbf16>
    %cst_12 = arith.constant dense<0.000000e+00> : vector<16x128xf32>
    %31 = tpu.matmul %29, %30, %cst_12 {dimension_numbers = #tpu.dot_dimension_numbers<[1], [0], [0], [1], [0, 0, 1, 1], [], []>} : vector<16x192xbf16>, vector<192x128xbf16>, vector<16x128xf32> -> vector<16x128xf32>
    %c0_13 = arith.constant 0 : index
    %c0_14 = arith.constant 0 : index
    %32 = vector.load %arg5[%c0_13, %c0_14] : memref<1x128xf32, #tpu.memory_space<vmem>>, vector<1x128xf32>
    %33 = vector.broadcast %32 : vector<1x128xf32> to vector<16x128xf32>
    %34 = arith.addf %31, %33 : vector<16x128xf32>
    %cst_15 = arith.constant 0.000000e+00 : f32
    %35 = vector.broadcast %cst_15 : f32 to vector<16x128xf32>
    %36 = arith.cmpf ogt, %34, %35 : vector<16x128xf32>
    %cst_16 = arith.constant 0.00999999977 : f32
    %37 = vector.broadcast %cst_16 : f32 to vector<16x128xf32>
    %38 = arith.mulf %37, %34 : vector<16x128xf32>
    %39 = arith.select %36, %34, %38 : vector<16x128xi1>, vector<16x128xf32>
    %40 = vector.shape_cast %39 : vector<16x128xf32> to vector<2x8x128xf32>
    %cst_17 = arith.constant dense<0.000000e+00> : vector<2x128xf32>
    %41 = vector.multi_reduction <add>, %40, %cst_17 [1] : vector<2x8x128xf32> to vector<2x128xf32>
    %42 = arith.truncf %41 : vector<2x128xf32> to vector<2x128xbf16>
    %c0_18 = arith.constant 0 : index
    %c0_19 = arith.constant 0 : index
    %43 = vector.load %arg6[%c0_18, %c0_19] : memref<128x128xbf16, #tpu.memory_space<vmem>>, vector<128x128xbf16>
    %cst_20 = arith.constant dense<0.000000e+00> : vector<2x128xf32>
    %44 = tpu.matmul %42, %43, %cst_20 {dimension_numbers = #tpu.dot_dimension_numbers<[1], [0], [0], [1], [0, 0, 1, 1], [], []>} : vector<2x128xbf16>, vector<128x128xbf16>, vector<2x128xf32> -> vector<2x128xf32>
    %c0_21 = arith.constant 0 : index
    %c0_22 = arith.constant 0 : index
    %45 = vector.load %arg7[%c0_21, %c0_22] : memref<1x128xf32, #tpu.memory_space<vmem>>, vector<1x128xf32>
    %46 = vector.broadcast %45 : vector<1x128xf32> to vector<2x128xf32>
    %47 = arith.addf %44, %46 : vector<2x128xf32>
    %c0_23 = arith.constant 0 : index
    %c0_24 = arith.constant 0 : index
    %48 = vector.load %arg8[%c0_23, %c0_24] : memref<2x128xf32, #tpu.memory_space<vmem>>, vector<2x128xf32>
    tpu.vector_store %arg8[%c0_23, %c0_24], %47 {strides = array<i32>} : memref<2x128xf32, #tpu.memory_space<vmem>>, vector<2x128xf32>,
    return
  }
  func.func @transform_0(%arg0: i32) -> (i32, i32) {
    %c0_i32 = arith.constant 0 : i32
    %c0_i32_0 = arith.constant 0 : i32
    return %arg0, %c0_i32 : i32, i32
  }
  func.func @transform_1(%arg0: i32) -> (i32, i32) {
    %c0_i32 = arith.constant 0 : i32
    %c0_i32_0 = arith.constant 0 : i32
    %c0_i32_1 = arith.constant 0 : i32
    return %c0_i32, %c0_i32_0 : i32, i32
  }
  func.func @transform_2(%arg0: i32) -> (i32, i32) {
    %c0_i32 = arith.constant 0 : i32
    %c0_i32_0 = arith.constant 0 : i32
    %c0_i32_1 = arith.constant 0 : i32
    return %c0_i32, %c0_i32_0 : i32, i32
  }
  func.func @transform_3(%arg0: i32) -> (i32, i32) {
    %c0_i32 = arith.constant 0 : i32
    %c0_i32_0 = arith.constant 0 : i32
    %c0_i32_1 = arith.constant 0 : i32
    return %c0_i32, %c0_i32_0 : i32, i32
  }
  func.func @transform_4(%arg0: i32) -> (i32, i32) {
    %c0_i32 = arith.constant 0 : i32
    %c0_i32_0 = arith.constant 0 : i32
    %c0_i32_1 = arith.constant 0 : i32
    return %c0_i32, %c0_i32_0 : i32, i32
  }
  func.func @transform_5(%arg0: i32) -> (i32, i32) {
    %c0_i32 = arith.constant 0 : i32
    %c0_i32_0 = arith.constant 0 : i32
    %c0_i32_1 = arith.constant 0 : i32
    return %c0_i32, %c0_i32_0 : i32, i32
  }
  func.func @transform_6(%arg0: i32) -> (i32, i32) {
    %c0_i32 = arith.constant 0 : i32
    %c0_i32_0 = arith.constant 0 : i32
    %c0_i32_1 = arith.constant 0 : i32
    return %c0_i32, %c0_i32_0 : i32, i32
  }
  func.func @transform_7(%arg0: i32) -> (i32, i32) {
    %c0_i32 = arith.constant 0 : i32
    %c0_i32_0 = arith.constant 0 : i32
    return %arg0, %c0_i32 : i32, i32
  }
}

</mosaic_0001>

<llo_original>
// kernel: cnn_encoder_forward.1
$region0: #{cnn_encoder_forward.1}
  #allocation0 [shape = 'u32[]', space=smem, size = 0x4, offset = 0x4, fixed_abs, tag = 'smem constant byte address 0x4 - core index']
  #allocation1 [shape = 'u32[144,128]{1,0:T(1,128)}', space=vmem, size = 0x12000, scoped, tag = 'internal scratch']
  %s0 = inlined_call_operand.vmem [shape: bf16[16,12], index: 0, kind: input, shape index: {}]
  %s1 = inlined_call_operand.vmem [shape: bf16[12,64], index: 1, kind: input, shape index: {}]
  %s2 = inlined_call_operand.vmem [shape: f32[1,64], index: 2, kind: input, shape index: {}]
  %s3 = inlined_call_operand.vmem [shape: bf16[192,128], index: 3, kind: input, shape index: {}]
  %s4 = inlined_call_operand.vmem [shape: f32[1,128], index: 4, kind: input, shape index: {}]
  %s5 = inlined_call_operand.hbm [shape: bf16[128,128], index: 5, kind: input, shape index: {}]
  %s6 = inlined_call_operand.vmem [shape: f32[1,128], index: 6, kind: input, shape index: {}]
  %s7 = inlined_call_operand.hbm [shape: f32[2,128], index: 7, kind: output, shape index: {}]
  %s8 = sld [smem:[#allocation0]]
  $region42: #{cnn_encoder_forward.1} parent=0
    _
  %s10 = ssub.s32 1, %s8
  %s11 = scalar_select 0, %s10, %s8
  $region1: #{cnn_encoder_forward.1} parent=0
    #allocation2 [shape = 'u8[32768]{0}', space=vmem, size = 0x8000, scoped, tag = 'input window, operand 5, single buffered']
    #allocation3 [shape = 's32[1]{0}', space=sflag, size = 0x4, scoped, tag = 'scoped memory for cnn_encoder_forward.1']
    #allocation4 [shape = 's32[1]{0}', space=sflag, size = 0x4, scoped, tag = 'scoped memory for cnn_encoder_forward.1']
    #allocation5 [shape = 'u8[1024]{0}', space=vmem, size = 0x400, scoped, tag = 'output window, operand 0, single buffered']
    %12 = vsyncpa [#allocation3], 0
    %13 = vsyncpa [#allocation4], 0
    // Predicated region
    $region2: #{cnn_encoder_forward.1} parent=1 // pred_check
      _
    $region3: #{cnn_encoder_forward.1} parent=1 // pred_check_branch
      %15 = sbr.rel (0) target = $region5
    $region4: #{cnn_encoder_forward.1} parent=1 // pred_region
      _
    $region5: #{cnn_encoder_forward.1} parent=1 // pred_fallthru
      _
    // Predicated region
    $region6: #{cnn_encoder_forward.1} parent=1 // pred_check
      _
    $region7: #{cnn_encoder_forward.1} parent=1 // pred_check_branch
      %17 = sbr.rel (0) target = $region9
    $region8: #{cnn_encoder_forward.1} parent=1 // pred_region
      _
    $region9: #{cnn_encoder_forward.1} parent=1 // pred_fallthru
      _
    // Predicated region
    $region10: #{cnn_encoder_forward.1} parent=1 // pred_check
      _
    $region11: #{cnn_encoder_forward.1} parent=1 // pred_check_branch
      %19 = sbr.rel (0) target = $region13
    $region12: #{cnn_encoder_forward.1} parent=1 // pred_region
      _
    $region13: #{cnn_encoder_forward.1} parent=1 // pred_fallthru
      _
    // Predicated region
    $region14: #{cnn_encoder_forward.1} parent=1 // pred_check
      _
    $region15: #{cnn_encoder_forward.1} parent=1 // pred_check_branch
      %21 = sbr.rel (0) target = $region17
    $region16: #{cnn_encoder_forward.1} parent=1 // pred_region
      _
    $region17: #{cnn_encoder_forward.1} parent=1 // pred_fallthru
      _
    // Predicated region
    $region18: #{cnn_encoder_forward.1} parent=1 // pred_check
      _
    $region19: #{cnn_encoder_forward.1} parent=1 // pred_check_branch
      %23 = sbr.rel (0) target = $region21
    $region20: #{cnn_encoder_forward.1} parent=1 // pred_region
      _
    $region21: #{cnn_encoder_forward.1} parent=1 // pred_fallthru
      _
    // Predicated region
    $region22: #{cnn_encoder_forward.1} parent=1 // pred_check
      _
    $region23: #{cnn_encoder_forward.1} parent=1 // pred_check_branch
      %25 = sbr.rel (0) target = $region25
    $region24: #{cnn_encoder_forward.1} parent=1 // pred_region
      %s27 = ssub.s32 1024, 1024
      %28 = vsyncadd [#allocation3], %s27
      %s29 = sshll.u32 [#allocation2], 4
      %s30 = int_to_ptr.vmem [resolvable:$true] %s29
      %35 = dma.hbm_to_vmem [thread:$0]  %s5, 1024, %s30, [#allocation3], 64, 64, 4
    $region25: #{cnn_encoder_forward.1} parent=1 // pred_fallthru
      _
    // Predicated region
    $region26: #{cnn_encoder_forward.1} parent=1 // pred_check
      _
    $region27: #{cnn_encoder_forward.1} parent=1 // pred_check_branch
      %37 = sbr.rel (0) target = $region29
    $region28: #{cnn_encoder_forward.1} parent=1 // pred_region
      _
    $region29: #{cnn_encoder_forward.1} parent=1 // pred_fallthru
      _
    // Predicated region
    $region30: #{cnn_encoder_forward.1} parent=1 // pred_check
      _
    $region31: #{cnn_encoder_forward.1} parent=1 // pred_check_branch
      %39 = sbr.rel (0) target = $region33
    $region32: #{cnn_encoder_forward.1} parent=1 // pred_region
      %40 = dma.done [#allocation3], 1024
    $region33: #{cnn_encoder_forward.1} parent=1 // pred_fallthru
      _
    %v42 = vld [vmem:[%s0] sm:$0xf]
    %v43 = vld [vmem:[%s0 + $0x4] sm:$0xf]
    %v44 = vld [vmem:[%s1] sm:$0xf]
    %v45 = vld [vmem:[%s1 + $0x4] sm:$0x3]
    %v46 = vld [vmem:[%s2] sm:$0x1]
    %v48 = vlaneseq
    %v49 = vshrl.u32 %v48, 7
    %v50 = vsub.s32 0, %v49
    %v51 = vrot.slane %v46, %v50
    %v55 = vunpack.c.l.b16 %v42
    %v56 = vunpack.c.l.b16 %v43
    %v57 = vpack.c.b16 %v56, %v55
    %v60 = vunpack.c.l.b16 %v44
    %v61 = vunpack.c.l.b16 %v45
    %v62 = vpack.c.b16 %v61, %v60
    %vm63 = vcmask 97280
    %v65 = vsel %vm63, %v57, 0
    %vm67 = vcmask 1045504
    %v69 = vsel %vm67, %v62, 0
    %71 = vmatprep.subr.bf16.mxu0 0
    %72 = vmatpush1.bf16.msra.mxu0 %v69
    %73 = vmatprep.subr.bf16.mxu0 0
    %74 = vmatpush1.bf16.msra.mxu0 0
    %75 = vmatprep.subr.bf16.mxu0 0
    %76 = vmatpush1.bf16.msra.mxu0 0
    %77 = vmatprep.subr.bf16.mxu0 0
    %78 = vmatpush1.bf16.msra.mxu0 0
    %79 = vmatprep.subr.bf16.mxu0 0
    %80 = vmatpush1.bf16.msra.mxu0 0
    %81 = vmatprep.subr.bf16.mxu0 0
    %82 = vmatpush1.bf16.msra.mxu0 0
    %83 = vmatprep.subr.bf16.mxu0 0
    %84 = vmatpush1.bf16.msra.mxu0 0
    %85 = vmatprep.subr.bf16.mxu0 0
    %86 = vmatpush1.bf16.msra.mxu0 0
    %87 = vmatprep.subr.bf16.mxu0 0
    %88 = vmatpush1.bf16.msra.mxu0 0
    %89 = vmatprep.subr.bf16.mxu0 0
    %90 = vmatpush1.bf16.msra.mxu0 0
    %91 = vmatprep.subr.bf16.mxu0 0
    %92 = vmatpush1.bf16.msra.mxu0 0
    %93 = vmatprep.subr.bf16.mxu0 0
    %94 = vmatpush1.bf16.msra.mxu0 0
    %95 = vmatprep.subr.bf16.mxu0 0
    %96 = vmatpush1.bf16.msra.mxu0 0
    %97 = vmatprep.subr.bf16.mxu0 0
    %98 = vmatpush1.bf16.msra.mxu0 0
    %99 = vmatprep.subr.bf16.mxu0 0
    %100 = vmatpush1.bf16.msra.mxu0 0
    %101 = vmatprep.subr.bf16.mxu0 0
    %102 = vmatpush1.bf16.msra.mxu0 0
    %103 = vmatprep.mubr.bf16.mxu0 0
    %104 = vmatmul.mubr.bf16.gmra.mrb[0].mxu0 %v65
    %v105 = vpop.f32.mrb[0].mxu0
    %v106 = vadd.f32 %v51, %v105
    %v107 = vpop.f32.mrb[0].mxu0
    %v108 = vpop.f32.mrb[0].mxu0
    %v109 = vadd.f32 %v51, %v108
    %v110 = vpop.f32.mrb[0].mxu0
    %111 = vdwg.mxu0
    %vm112 = vcmp.gt.f32.partialorder %v106, 0.0
    %vm113 = vcmp.gt.f32.partialorder %v109, 0.0
    %v114 = vmul.f32 %v106, 0.01
    %v115 = vmul.f32 %v109, 0.01
    %v116 = vsel %vm112, %v106, %v114
    %v117 = vsel %vm113, %v109, %v115
    %v118 = vlaneseq
    %v119 = vshrl.u32 %v118, 7
    %vm120 = vcmp.eq.s32.totalorder %v119, 0
    %v121 = vrot.slane %v116, 7
    %v122 = vrot.slane %v117, 7
    %v123 = vsel %vm120, 1, 0
    %vm124 = vcmp.eq.s32.totalorder %v123, 1
    %v125 = vsel %vm124, 0.0, %v121
    %v126 = vsel %vm124, 0.0, %v122
    %vm127 = vcmp.eq.s32.totalorder %v119, 7
    %v128 = vrot.slane %v116, 1
    %v129 = vrot.slane %v117, 1
    %v130 = vsel %vm127, 1, 0
    %vm131 = vcmp.eq.s32.totalorder %v130, 1
    %v132 = vsel %vm131, 0.0, %v128
    %v133 = vsel %vm131, 0.0, %v129
    %136 = vrot.lane.b32.xlu0 %v116, 64
    %v137 = vpop.permute.xlu0 %136
    %138 = vrot.lane.b32.xlu0 %v117, 64
    %v139 = vpop.permute.xlu0 %138
    %vm142 = vcmask 523264
    %v143 = vsel %vm142, %v125, %v137
    %v144 = vsel %vm142, %v126, %v139
    %v145 = vpack.c.bf16 %v144, %v143
    %v146 = vpack.c.bf16 %v133, %v132
    %v147 = vld [vmem:[%s3] sm:$0xf]
    %v148 = vld [vmem:[%s3 + $0x4] sm:$0xf]
    %v149 = vld [vmem:[%s3 + $0x8] sm:$0xf]
    %v150 = vld [vmem:[%s3 + $0xc] sm:$0xf]
    %v151 = vld [vmem:[%s3 + $0x10] sm:$0xf]
    %v152 = vld [vmem:[%s3 + $0x14] sm:$0xf]
    %v153 = vld [vmem:[%s3 + $0x18] sm:$0xf]
    %v154 = vld [vmem:[%s3 + $0x1c] sm:$0xf]
    %v155 = vld [vmem:[%s3 + $0x20] sm:$0xf]
    %v156 = vld [vmem:[%s3 + $0x24] sm:$0xf]
    %v157 = vld [vmem:[%s3 + $0x28] sm:$0xf]
    %v158 = vld [vmem:[%s3 + $0x2c] sm:$0xf]
    %v159 = vld [vmem:[%s3 + $0x30] sm:$0xf]
    %v160 = vld [vmem:[%s3 + $0x34] sm:$0xf]
    %v161 = vld [vmem:[%s3 + $0x38] sm:$0xf]
    %v162 = vld [vmem:[%s3 + $0x3c] sm:$0xf]
    %v163 = vld [vmem:[%s3 + $0x40] sm:$0xf]
    %v164 = vld [vmem:[%s3 + $0x44] sm:$0xf]
    %v165 = vld [vmem:[%s3 + $0x48] sm:$0xf]
    %v166 = vld [vmem:[%s3 + $0x4c] sm:$0xf]
    %v167 = vld [vmem:[%s3 + $0x50] sm:$0xf]
    %v168 = vld [vmem:[%s3 + $0x54] sm:$0xf]
    %v169 = vld [vmem:[%s3 + $0x58] sm:$0xf]
    %v170 = vld [vmem:[%s3 + $0x5c] sm:$0xf]
    %v171 = vld [vmem:[%s4] sm:$0x1]
    %v173 = vlaneseq
    %v174 = vshrl.u32 %v173, 7
    %v175 = vsub.s32 0, %v174
    %v176 = vrot.slane %v171, %v175
    %v202 = vunpack.c.l.b16 %v147
    %v203 = vunpack.c.l.b16 %v148
    %v204 = vunpack.c.l.b16 %v149
    %v205 = vunpack.c.l.b16 %v150
    %v206 = vunpack.c.l.b16 %v151
    %v207 = vunpack.c.l.b16 %v152
    %v208 = vunpack.c.l.b16 %v153
    %v209 = vunpack.c.l.b16 %v154
    %v210 = vunpack.c.l.b16 %v155
    %v211 = vunpack.c.l.b16 %v156
    %v212 = vunpack.c.l.b16 %v157
    %v213 = vunpack.c.l.b16 %v158
    %v214 = vunpack.c.l.b16 %v159
    %v215 = vunpack.c.l.b16 %v160
    %v216 = vunpack.c.l.b16 %v161
    %v217 = vunpack.c.l.b16 %v162
    %v218 = vunpack.c.l.b16 %v163
    %v219 = vunpack.c.l.b16 %v164
    %v220 = vunpack.c.l.b16 %v165
    %v221 = vunpack.c.l.b16 %v166
    %v222 = vunpack.c.l.b16 %v167
    %v223 = vunpack.c.l.b16 %v168
    %v224 = vunpack.c.l.b16 %v169
    %v225 = vunpack.c.l.b16 %v170
    %v226 = vpack.c.b16 %v203, %v202
    %v227 = vpack.c.b16 %v205, %v204
    %v228 = vpack.c.b16 %v207, %v206
    %v229 = vpack.c.b16 %v209, %v208
    %v230 = vpack.c.b16 %v211, %v210
    %v231 = vpack.c.b16 %v213, %v212
    %v232 = vpack.c.b16 %v215, %v214
    %v233 = vpack.c.b16 %v217, %v216
    %v234 = vpack.c.b16 %v219, %v218
    %v235 = vpack.c.b16 %v221, %v220
    %v236 = vpack.c.b16 %v223, %v222
    %v237 = vpack.c.b16 %v225, %v224
    %v251 = vsel %vm142, %v146, 0
    %253 = vmatprep.subr.bf16.mxu0 0
    %254 = vmatpush1.bf16.msra.mxu0 %v226
    %255 = vmatprep.subr.bf16.mxu0 0
    %256 = vmatpush1.bf16.msra.mxu0 %v227
    %257 = vmatprep.subr.bf16.mxu0 0
    %258 = vmatpush1.bf16.msra.mxu0 %v228
    %259 = vmatprep.subr.bf16.mxu0 0
    %260 = vmatpush1.bf16.msra.mxu0 %v229
    %261 = vmatprep.subr.bf16.mxu0 0
    %262 = vmatpush1.bf16.msra.mxu0 %v230
    %263 = vmatprep.subr.bf16.mxu0 0
    %264 = vmatpush1.bf16.msra.mxu0 %v231
    %265 = vmatprep.subr.bf16.mxu0 0
    %266 = vmatpush1.bf16.msra.mxu0 %v232
    %267 = vmatprep.subr.bf16.mxu0 0
    %268 = vmatpush1.bf16.msra.mxu0 %v233
    %269 = vmatprep.subr.bf16.mxu0 0
    %270 = vmatpush1.bf16.msra.mxu0 %v234
    %271 = vmatprep.subr.bf16.mxu0 0
    %272 = vmatpush1.bf16.msra.mxu0 %v235
    %273 = vmatprep.subr.bf16.mxu0 0
    %274 = vmatpush1.bf16.msra.mxu0 %v236
    %275 = vmatprep.subr.bf16.mxu0 0
    %276 = vmatpush1.bf16.msra.mxu0 %v237
    %277 = vmatprep.subr.bf16.mxu0 0
    %278 = vmatpush1.bf16.msra.mxu0 0
    %279 = vmatprep.subr.bf16.mxu0 0
    %280 = vmatpush1.bf16.msra.mxu0 0
    %281 = vmatprep.subr.bf16.mxu0 0
    %282 = vmatpush1.bf16.msra.mxu0 0
    %283 = vmatprep.subr.bf16.mxu0 0
    %284 = vmatpush1.bf16.msra.mxu0 0
    %285 = vmatprep.mubr.bf16.mxu0 %v251
    %286 = vmatmul.mubr.bf16.gmra.mrb[0].mxu0 %v145
    %v287 = vpop.f32.mrb[0].mxu0
    %v288 = vadd.f32 %v176, %v287
    %v289 = vpop.f32.mrb[0].mxu0
    %v290 = vpop.f32.mrb[0].mxu0
    %v291 = vadd.f32 %v176, %v290
    %v292 = vpop.f32.mrb[0].mxu0
    %293 = vdwg.mxu0
    %vm294 = vcmp.gt.f32.partialorder %v288, 0.0
    %vm295 = vcmp.gt.f32.partialorder %v291, 0.0
    %v296 = vmul.f32 %v288, 0.01
    %v297 = vmul.f32 %v291, 0.01
    %v298 = vsel %vm294, %v288, %v296
    %v299 = vsel %vm295, %v291, %v297
    %v300 = vrot.slane %v298, 4
    %v301 = vadd.f32 %v298, %v300
    %v302 = vrot.slane %v301, 2
    %v303 = vadd.f32 %v301, %v302
    %v304 = vrot.slane %v303, 1
    %v305 = vadd.f32 %v303, %v304
    %v306 = vrot.slane %v299, 4
    %v307 = vadd.f32 %v299, %v306
    %v308 = vrot.slane %v307, 2
    %v309 = vadd.f32 %v307, %v308
    %v310 = vrot.slane %v309, 1
    %v311 = vadd.f32 %v309, %v310
    %v312 = vpack.c.bf16 %v305, %v305
    %v313 = vpack.c.bf16 %v311, %v311
    %v314 = vld [vmem:[#allocation2] sm:$0xf]
    %v315 = vld [vmem:[#allocation2 + $0x4] sm:$0xf]
    %v316 = vld [vmem:[#allocation2 + $0x8] sm:$0xf]
    %v317 = vld [vmem:[#allocation2 + $0xc] sm:$0xf]
    %v318 = vld [vmem:[#allocation2 + $0x10] sm:$0xf]
    %v319 = vld [vmem:[#allocation2 + $0x14] sm:$0xf]
    %v320 = vld [vmem:[#allocation2 + $0x18] sm:$0xf]
    %v321 = vld [vmem:[#allocation2 + $0x1c] sm:$0xf]
    %v322 = vld [vmem:[#allocation2 + $0x20] sm:$0xf]
    %v323 = vld [vmem:[#allocation2 + $0x24] sm:$0xf]
    %v324 = vld [vmem:[#allocation2 + $0x28] sm:$0xf]
    %v325 = vld [vmem:[#allocation2 + $0x2c] sm:$0xf]
    %v326 = vld [vmem:[#allocation2 + $0x30] sm:$0xf]
    %v327 = vld [vmem:[#allocation2 + $0x34] sm:$0xf]
    %v328 = vld [vmem:[#allocation2 + $0x38] sm:$0xf]
    %v329 = vld [vmem:[#allocation2 + $0x3c] sm:$0xf]
    %v330 = vld [vmem:[%s6] sm:$0x1]
    %v332 = vlaneseq
    %v333 = vshrl.u32 %v332, 7
    %v334 = vsub.s32 0, %v333
    %v335 = vrot.slane %v330, %v334
    %v339 = vunpack.c.l.b16 %v312
    %v340 = vunpack.c.l.b16 %v313
    %vm341 = vcmask 1041409
    %v342 = vsel %vm341, %v340, %v339
    %v343 = vpack.c.b16 %v342, %v342
    %v361 = vunpack.c.l.b16 %v314
    %v362 = vunpack.c.l.b16 %v315
    %v363 = vunpack.c.l.b16 %v316
    %v364 = vunpack.c.l.b16 %v317
    %v365 = vunpack.c.l.b16 %v318
    %v366 = vunpack.c.l.b16 %v319
    %v367 = vunpack.c.l.b16 %v320
    %v368 = vunpack.c.l.b16 %v321
    %v369 = vunpack.c.l.b16 %v322
    %v370 = vunpack.c.l.b16 %v323
    %v371 = vunpack.c.l.b16 %v324
    %v372 = vunpack.c.l.b16 %v325
    %v373 = vunpack.c.l.b16 %v326
    %v374 = vunpack.c.l.b16 %v327
    %v375 = vunpack.c.l.b16 %v328
    %v376 = vunpack.c.l.b16 %v329
    %v377 = vpack.c.b16 %v362, %v361
    %v378 = vpack.c.b16 %v364, %v363
    %v379 = vpack.c.b16 %v366, %v365
    %v380 = vpack.c.b16 %v368, %v367
    %v381 = vpack.c.b16 %v370, %v369
    %v382 = vpack.c.b16 %v372, %v371
    %v383 = vpack.c.b16 %v374, %v373
    %v384 = vpack.c.b16 %v376, %v375
    %393 = vmatprep.subr.bf16.mxu0 0
    %394 = vmatpush1.bf16.msra.mxu0 %v377
    %395 = vmatprep.subr.bf16.mxu0 0
    %396 = vmatpush1.bf16.msra.mxu0 %v378
    %397 = vmatprep.subr.bf16.mxu0 0
    %398 = vmatpush1.bf16.msra.mxu0 %v379
    %399 = vmatprep.subr.bf16.mxu0 0
    %400 = vmatpush1.bf16.msra.mxu0 %v380
    %401 = vmatprep.subr.bf16.mxu0 0
    %402 = vmatpush1.bf16.msra.mxu0 %v381
    %403 = vmatprep.subr.bf16.mxu0 0
    %404 = vmatpush1.bf16.msra.mxu0 %v382
    %405 = vmatprep.subr.bf16.mxu0 0
    %406 = vmatpush1.bf16.msra.mxu0 %v383
    %407 = vmatprep.subr.bf16.mxu0 0
    %408 = vmatpush1.bf16.msra.mxu0 %v384
    %409 = vmatprep.subr.bf16.mxu0 0
    %410 = vmatpush1.bf16.msra.mxu0 0
    %411 = vmatprep.subr.bf16.mxu0 0
    %412 = vmatpush1.bf16.msra.mxu0 0
    %413 = vmatprep.subr.bf16.mxu0 0
    %414 = vmatpush1.bf16.msra.mxu0 0
    %415 = vmatprep.subr.bf16.mxu0 0
    %416 = vmatpush1.bf16.msra.mxu0 0
    %417 = vmatprep.subr.bf16.mxu0 0
    %418 = vmatpush1.bf16.msra.mxu0 0
    %419 = vmatprep.subr.bf16.mxu0 0
    %420 = vmatpush1.bf16.msra.mxu0 0
    %421 = vmatprep.subr.bf16.mxu0 0
    %422 = vmatpush1.bf16.msra.mxu0 0
    %423 = vmatprep.subr.bf16.mxu0 0
    %424 = vmatpush1.bf16.msra.mxu0 0
    %425 = vmatprep.mubr.bf16.mxu0 0
    %426 = vmatmul.mubr.bf16.gmra.mrb[0].mxu0 %v343
    %v427 = vpop.f32.mrb[0].mxu0
    %v428 = vadd.f32 %v335, %v427
    %v429 = vpop.f32.mrb[0].mxu0
    %v430 = vpop.f32.mrb[0].mxu0
    %v431 = vpop.f32.mrb[0].mxu0
    %432 = vdwg.mxu0
    %433 = vst [vmem:[#allocation5] sm:$0x3] %v428
    // Predicated region
    $region34: #{cnn_encoder_forward.1} parent=1 // pred_check
      _
    $region35: #{cnn_encoder_forward.1} parent=1 // pred_check_branch
      %435 = sbr.rel (0) target = $region37
    $region36: #{cnn_encoder_forward.1} parent=1 // pred_region
      %s437 = ssub.s32 32, 32
      %438 = vsyncadd [#allocation4], %s437
      %s440 = sshll.u32 [#allocation5], 4
      %s441 = int_to_ptr.vmem [resolvable:$true] %s440
      %443 = dma.vmem_to_hbm [thread:$0]  %s441, 32, %s7, [#allocation4]
    $region37: #{cnn_encoder_forward.1} parent=1 // pred_fallthru
      _
    // Predicated region
    $region38: #{cnn_encoder_forward.1} parent=1 // pred_check
      _
    $region39: #{cnn_encoder_forward.1} parent=1 // pred_check_branch
      %445 = sbr.rel (0) target = $region41
    $region40: #{cnn_encoder_forward.1} parent=1 // pred_region
      %446 = dma.done [#allocation4], 32
    $region41: #{cnn_encoder_forward.1} parent=1 // pred_fallthru
      _
    %447 = vsyncpa [#allocation3], 1
    %448 = vsyncpa [#allocation4], 1

</llo_original>
